<compile_context>
chip_gen: v7x
topology: tpu7x:2x2x1
jax: 0.10.0
libtpu: 0.0.40
codegen_flags: <defaults>
</compile_context>

<pallas_src>
import functools
import math

import jax
import jax.numpy as jnp
from jax import lax
from jax.experimental import pallas as pl
from jax.experimental.pallas import tpu as pltpu

# Module hyper-parameters: MixedLoss(alpha=10, gamma=2).
# FocalLoss(gamma_mixed) => focal.alpha = gamma_mixed, focal.gamma = 10 (default).
MIX_ALPHA = 10.0
MIX_GAMMA = 2.0
FOCAL_ALPHA = MIX_GAMMA        # FocalLoss.__init__(alpha=gamma_mixed)
FOCAL_GAMMA_INT = 10           # FocalLoss default gamma (integer -> repeated squaring)
DICE_EPS = 0.001

LANES = 128
ROWS_PER_TILE = 2048           # 1 MiB f32 per stream per tile; sweep 1024-4096
MAX_CORE_SPLITS = 2            # cap on the leading "parallel" axis (dual-TC chips)


def _num_tensorcores() -> int:
    """Best-effort TensorCores-per-device (v5e/v6e: 1, v7x: 2). Never raises."""
    candidates = []
    try:
        dev = jax.devices()[0]
        for attr in ("num_cores", "core_count"):
            candidates.append(getattr(dev, attr, None))
    except Exception:
        pass
    try:
        info = pltpu.get_tpu_info()
        for attr in ("num_cores", "num_tensorcores", "tensorcore_count"):
            candidates.append(getattr(info, attr, None))
    except Exception:
        pass
    for v in candidates:
        try:
            v = int(v)
        except (TypeError, ValueError):
            continue
        if 1 <= v <= 16:
            return v
    return 1


def _mixed_loss_kernel(x_ref, t_ref, f_ref, i_ref, u_ref, *,
                       rows_per_tile, tiles_per_split, vr, vl, emit_mask):
    """Per-tile elementwise focal/dice terms, accumulated into VMEM-resident
    lane-dense output blocks.  vr = n_valid // 128, vl = n_valid % 128."""
    c = pl.program_id(0)       # core-split index ("parallel")
    step = pl.program_id(1)    # reduction step   ("arbitrary")

    @pl.when(step == 0)
    def _():
        f_ref[...] = jnp.zeros_like(f_ref)
        i_ref[...] = jnp.zeros_like(i_ref)
        u_ref[...] = jnp.zeros_like(u_ref)

    x = x_ref[...].astype(jnp.float32)
    t = t_ref[...].astype(jnp.float32)

    # Numerically stable BCE-with-logits; e = exp(-|x|) reused for the sigmoid.
    e = jnp.exp(-jnp.abs(x))
    xt = x * t
    mx = jnp.maximum(x, 0.0)
    bce = mx - xt + jnp.log1p(e)

    # 1/(1+e): EUP approx reciprocal + one Newton step (restores ~f32 accuracy,
    # keeps the divide off the VALU).
    d = 1.0 + e
    r0 = pl.reciprocal(d, approx=True)
    recip = r0 * (2.0 - d * r0)

    # pt = exp(-bce) == exp(x*t - max(x,0)) / (1 + e); reuses recip and breaks
    # the exp -> log1p -> exp serial EUP chain. Exponent <= 0 for t in [0,1].
    pt = jnp.exp(xt - mx) * recip

    # (1 - pt) ** 10 by repeated squaring (VPU only).  FOCAL_ALPHA applied in
    # the wrapper on the final sum.
    u1 = 1.0 - pt
    u2 = u1 * u1
    u4 = u2 * u2
    u8 = u4 * u4
    focal = (u8 * u2) * bce

    # sigmoid(x) reusing e: x>=0 -> 1/(1+e), x<0 -> e/(1+e).
    pred = jnp.where(x >= 0.0, recip, e * recip)
    inter = pred * t
    union = pred + t

    if not emit_mask:
        # Grid covers n_valid exactly: no mask code emitted at all.
        f_ref[...] += focal
        i_ref[...] += inter
        u_ref[...] += union
    else:
        # Row-level index math only (stays < 2**31 even for huge arrays).
        block = c * tiles_per_split + step
        row_start = block * rows_per_tile
        needs_mask = row_start + rows_per_tile > vr

        @pl.when(jnp.logical_not(needs_mask))
        def _():
            f_ref[...] += focal
            i_ref[...] += inter
            u_ref[...] += union

        @pl.when(needs_mask)     # only the boundary / whole-padding tiles
        def _():
            row = lax.broadcasted_iota(jnp.int32, (rows_per_tile, LANES), 0)
            lane = lax.broadcasted_iota(jnp.int32, (rows_per_tile, LANES), 1)
            grow = row_start + row
            valid = (grow < vr) | ((grow == vr) & (lane < vl))
            # jnp.where selects (not multiplies): safe against NaN/Inf in the
            # unspecified out-of-bounds region of a partial boundary block.
            f_ref[...] += jnp.where(valid, focal, 0.0)
            i_ref[...] += jnp.where(valid, inter, 0.0)
            u_ref[...] += jnp.where(valid, union, 0.0)


def mixed_loss(inputs, target, *, rows_per_tile=ROWS_PER_TILE):
    """inputs, target: same shape (e.g. NCHW), any float dtype. Scalar f32 loss."""
    assert inputs.shape == target.shape
    n_valid = int(math.prod(inputs.shape))
    assert n_valid > 0

    x = inputs.reshape(-1)          # free reshape; keep original dtype
    t = target.reshape(-1)

    vr, vl = divmod(n_valid, LANES)
    pad128 = (-n_valid) % LANES
    if pad128:
        # TODO(synk): rare fallback copy (numel not a multiple of 128); a
        # zero-copy path would need memory_space=pl.ANY + manual bounded DMA.
        x = jnp.pad(x, (0, pad128))
        t = jnp.pad(t, (0, pad128))
    R = (n_valid + pad128) // LANES
    x2 = x.reshape(R, LANES)        # free reshape of a contiguous buffer
    t2 = t.reshape(R, LANES)

    rows_per_tile = min(int(rows_per_tile), R)
    if rows_per_tile < R:
        rows_per_tile = max(8, (rows_per_tile // 8) * 8)   # (8,128) tiling rule

    tiles_total = -(-R // rows_per_tile)
    num_splits = max(1, min(_num_tensorcores(), MAX_CORE_SPLITS, tiles_total))
    tiles_per_split = -(-tiles_total // num_splits)

    # Static: does the grid cover exactly n_valid elements?  If so, never emit
    # any mask code.
    emit_mask = (vl != 0) or (num_splits * tiles_per_split * rows_per_tile != vr)

    last_block = tiles_total - 1

    def in_map(c, i):
        # Clamp: ragged ceil-splits may address blocks past the array; the
        # kernel's masked branch zeroes their contribution.
        return (jnp.minimum(c * tiles_per_split + i, last_block), 0)

    in_spec = pl.BlockSpec((rows_per_tile, LANES), in_map)
    out_spec = pl.BlockSpec((pl.Squeezed(), rows_per_tile, LANES),
                            lambda c, i: (c, 0, 0))
    out_sds = jax.ShapeDtypeStruct((num_splits, rows_per_tile, LANES),
                                   jnp.float32)

    kernel = functools.partial(
        _mixed_loss_kernel,
        rows_per_tile=rows_per_tile,
        tiles_per_split=tiles_per_split,
        vr=vr, vl=vl, emit_mask=emit_mask)

    f_part, i_part, u_part = pl.pallas_call(
        kernel,
        out_shape=(out_sds, out_sds, out_sds),
        grid_spec=pltpu.PrefetchScalarGridSpec(
            num_scalar_prefetch=0,
            grid=(num_splits, tiles_per_split),
            in_specs=[in_spec, in_spec],
            out_specs=(out_spec, out_spec, out_spec),
        ),
        compiler_params=pltpu.CompilerParams(
            dimension_semantics=("parallel", "arbitrary"),
            vmem_limit_bytes=32 * 1024 * 1024),
    )(x2, t2)

    # Tiny final reductions + focal/dice combine in plain JAX.
    focal_mean = (FOCAL_ALPHA / n_valid) * jnp.sum(f_part)
    inter = jnp.sum(i_part)
    union = jnp.sum(u_part)
    dice = (2.0 * inter + DICE_EPS) / (union + DICE_EPS)
    return MIX_ALPHA * focal_mean - jnp.log(dice)


def _mixed_loss_ref(inputs, target):
    x = inputs.astype(jnp.float32)
    t = target.astype(jnp.float32)
    bce = jnp.maximum(x, 0.0) - x * t + jnp.log1p(jnp.exp(-jnp.abs(x)))
    pt = jnp.exp(-bce)
    focal = jnp.mean(FOCAL_ALPHA * (1.0 - pt) ** FOCAL_GAMMA_INT * bce)
    pred = jax.nn.sigmoid(x)
    dice = ((2.0 * pred * t).sum() + DICE_EPS) / ((pred + t).sum() + DICE_EPS)
    return MIX_ALPHA * focal - jnp.log(dice)


if __name__ == "__main__":
    key = jax.random.PRNGKey(0)
    k1, k2 = jax.random.split(key)

    cases = []

    # Primary small NCHW case: batch=2, channels=4, spatial=16x16 (n % 128 == 0,
    # exactly one full tile -> fully unmasked path).
    shp = (2, 4, 16, 16)
    x0 = jax.random.normal(k1, shp, dtype=jnp.float32)
    t0 = jax.random.bernoulli(k2, p=0.3, shape=shp).astype(jnp.float32)
    cases.append((x0, t0, {}))

    # Ragged case: numel not a multiple of 128 -> pad fallback + masked branch.
    k3, k4 = jax.random.split(k1)
    shp2 = (2, 3, 17, 19)
    x1 = jax.random.normal(k3, shp2, dtype=jnp.float32)
    t1 = jax.random.bernoulli(k4, p=0.3, shape=shp2).astype(jnp.float32)
    cases.append((x1, t1, {}))

    # Multi-tile case with a partial boundary tile (tiny tile override exercises
    # the out-of-bounds-block masking that the default 2048-row tile uses at scale).
    k5, k6 = jax.random.split(k2)
    shp3 = (2, 4, 16, 20)
    x2 = jax.random.normal(k5, shp3, dtype=jnp.float32)
    t2 = jax.random.bernoulli(k6, p=0.3, shape=shp3).astype(jnp.float32)
    cases.append((x2, t2, {"rows_per_tile": 8}))

    for xi, ti, kw in cases:
        loss = jax.block_until_ready(mixed_loss(xi, ti, **kw))
        ref = jax.block_until_ready(_mixed_loss_ref(xi, ti))
        assert jnp.isfinite(loss), "kernel produced non-finite loss"
        assert jnp.allclose(loss, ref, rtol=1e-5, atol=1e-5), (kw, loss, ref)

    print("KERNEL_OK")
</pallas_src>

<mosaic_0001>
module attributes {stable_mosaic.version = 11 : i64} {
  func.func @_mixed_loss_kernel(%arg0: i32, %arg1: i32, %arg2: memref<16x128xf32, #tpu.memory_space<vmem>>, %arg3: memref<16x128xf32, #tpu.memory_space<vmem>>, %arg4: memref<1x16x128xf32, #tpu.memory_space<vmem>>, %arg5: memref<1x16x128xf32, #tpu.memory_space<vmem>>, %arg6: memref<1x16x128xf32, #tpu.memory_space<vmem>>) attributes {dimension_semantics = [#tpu.dimension_semantics<parallel>, #tpu.dimension_semantics<arbitrary>], iteration_bounds = array<i64: 1, 1>, scalar_prefetch = 0 : i64, scratch_operands = 0 : i64, tpu.core_type = #tpu.core_type<tc>, window_params = [{transform_indices = @transform_0, window_bounds = array<i64: 16, 128>}, {transform_indices = @transform_1, window_bounds = array<i64: 16, 128>}, {transform_indices = @transform_2, window_bounds = array<i64: 1, 16, 128>}, {transform_indices = @transform_3, window_bounds = array<i64: 1, 16, 128>}, {transform_indices = @transform_4, window_bounds = array<i64: 1, 16, 128>}]} {
    %c0_i32 = arith.constant 0 : i32
    %0 = arith.cmpi eq, %arg1, %c0_i32 : i32
    %1 = arith.extui %0 : i1 to i32
    %c0_i32_0 = arith.constant 0 : i32
    %2 = arith.cmpi ne, %1, %c0_i32_0 : i32
    scf.if %2 {
      %cst_27 = arith.constant 0.000000e+00 : f32
      %56 = vector.broadcast %cst_27 : f32 to vector<16x128xf32>
      %c0_28 = arith.constant 0 : index
      %c0_29 = arith.constant 0 : index
      %c0_30 = arith.constant 0 : index
      %57 = vector.load %arg4[%c0_28, %c0_29, %c0_30] : memref<1x16x128xf32, #tpu.memory_space<vmem>>, vector<1x16x128xf32>
      %58 = vector.shape_cast %57 : vector<1x16x128xf32> to vector<16x128xf32>
      %59 = vector.shape_cast %56 : vector<16x128xf32> to vector<1x16x128xf32>
      tpu.vector_store %arg4[%c0_28, %c0_29, %c0_30], %59 {strides = array<i32>} : memref<1x16x128xf32, #tpu.memory_space<vmem>>, vector<1x16x128xf32>,
      %cst_31 = arith.constant 0.000000e+00 : f32
      %60 = vector.broadcast %cst_31 : f32 to vector<16x128xf32>
      %c0_32 = arith.constant 0 : index
      %c0_33 = arith.constant 0 : index
      %c0_34 = arith.constant 0 : index
      %61 = vector.load %arg5[%c0_32, %c0_33, %c0_34] : memref<1x16x128xf32, #tpu.memory_space<vmem>>, vector<1x16x128xf32>
      %62 = vector.shape_cast %61 : vector<1x16x128xf32> to vector<16x128xf32>
      %63 = vector.shape_cast %60 : vector<16x128xf32> to vector<1x16x128xf32>
      tpu.vector_store %arg5[%c0_32, %c0_33, %c0_34], %63 {strides = array<i32>} : memref<1x16x128xf32, #tpu.memory_space<vmem>>, vector<1x16x128xf32>,
      %cst_35 = arith.constant 0.000000e+00 : f32
      %64 = vector.broadcast %cst_35 : f32 to vector<16x128xf32>
      %c0_36 = arith.constant 0 : index
      %c0_37 = arith.constant 0 : index
      %c0_38 = arith.constant 0 : index
      %65 = vector.load %arg6[%c0_36, %c0_37, %c0_38] : memref<1x16x128xf32, #tpu.memory_space<vmem>>, vector<1x16x128xf32>
      %66 = vector.shape_cast %65 : vector<1x16x128xf32> to vector<16x128xf32>
      %67 = vector.shape_cast %64 : vector<16x128xf32> to vector<1x16x128xf32>
      tpu.vector_store %arg6[%c0_36, %c0_37, %c0_38], %67 {strides = array<i32>} : memref<1x16x128xf32, #tpu.memory_space<vmem>>, vector<1x16x128xf32>,
    } else {
    }
    %c0 = arith.constant 0 : index
    %c0_1 = arith.constant 0 : index
    %3 = vector.load %arg2[%c0, %c0_1] : memref<16x128xf32, #tpu.memory_space<vmem>>, vector<16x128xf32>
    %c0_2 = arith.constant 0 : index
    %c0_3 = arith.constant 0 : index
    %4 = vector.load %arg3[%c0_2, %c0_3] : memref<16x128xf32, #tpu.memory_space<vmem>>, vector<16x128xf32>
    %5 = math.absf %3 : vector<16x128xf32>
    %cst = arith.constant 0.000000e+00 : f32
    %6 = vector.broadcast %cst : f32 to vector<16x128xf32>
    %7 = arith.subf %6, %5 : vector<16x128xf32>
    %8 = math.exp %7 : vector<16x128xf32>
    %9 = arith.mulf %3, %4 : vector<16x128xf32>
    %cst_4 = arith.constant 0.000000e+00 : f32
    %10 = vector.broadcast %cst_4 : f32 to vector<16x128xf32>
    %11 = arith.maximumf %3, %10 : vector<16x128xf32>
    %12 = arith.subf %11, %9 : vector<16x128xf32>
    %13 = math.log1p %8 : vector<16x128xf32>
    %14 = arith.addf %12, %13 : vector<16x128xf32>
    %cst_5 = arith.constant 1.000000e+00 : f32
    %15 = vector.broadcast %cst_5 : f32 to vector<16x128xf32>
    %16 = arith.addf %15, %8 : vector<16x128xf32>
    %17 = tpu.reciprocal %16 {approx = true} : vector<16x128xf32> -> vector<16x128xf32>
    %18 = arith.mulf %16, %17 : vector<16x128xf32>
    %cst_6 = arith.constant 2.000000e+00 : f32
    %19 = vector.broadcast %cst_6 : f32 to vector<16x128xf32>
    %20 = arith.subf %19, %18 : vector<16x128xf32>
    %21 = arith.mulf %17, %20 : vector<16x128xf32>
    %22 = arith.subf %9, %11 : vector<16x128xf32>
    %23 = math.exp %22 : vector<16x128xf32>
    %24 = arith.mulf %23, %21 : vector<16x128xf32>
    %cst_7 = arith.constant 1.000000e+00 : f32
    %25 = vector.broadcast %cst_7 : f32 to vector<16x128xf32>
    %26 = arith.subf %25, %24 : vector<16x128xf32>
    %27 = arith.mulf %26, %26 : vector<16x128xf32>
    %28 = arith.mulf %27, %27 : vector<16x128xf32>
    %29 = arith.mulf %28, %28 : vector<16x128xf32>
    %30 = arith.mulf %29, %27 : vector<16x128xf32>
    %31 = arith.mulf %30, %14 : vector<16x128xf32>
    %cst_8 = arith.constant 0.000000e+00 : f32
    %32 = vector.broadcast %cst_8 : f32 to vector<16x128xf32>
    %33 = arith.cmpf oge, %3, %32 : vector<16x128xf32>
    %34 = arith.mulf %8, %21 : vector<16x128xf32>
    %35 = arith.select %33, %21, %34 : vector<16x128xi1>, vector<16x128xf32>
    %36 = arith.mulf %35, %4 : vector<16x128xf32>
    %37 = arith.addf %35, %4 : vector<16x128xf32>
    %c0_9 = arith.constant 0 : index
    %c0_10 = arith.constant 0 : index
    %c0_11 = arith.constant 0 : index
    %38 = vector.load %arg4[%c0_9, %c0_10, %c0_11] : memref<1x16x128xf32, #tpu.memory_space<vmem>>, vector<1x16x128xf32>
    %39 = vector.shape_cast %38 : vector<1x16x128xf32> to vector<16x128xf32>
    %40 = arith.addf %39, %31 : vector<16x128xf32>
    %c0_12 = arith.constant 0 : index
    %c0_13 = arith.constant 0 : index
    %c0_14 = arith.constant 0 : index
    %41 = vector.load %arg4[%c0_12, %c0_13, %c0_14] : memref<1x16x128xf32, #tpu.memory_space<vmem>>, vector<1x16x128xf32>
    %42 = vector.shape_cast %41 : vector<1x16x128xf32> to vector<16x128xf32>
    %43 = vector.shape_cast %40 : vector<16x128xf32> to vector<1x16x128xf32>
    tpu.vector_store %arg4[%c0_12, %c0_13, %c0_14], %43 {strides = array<i32>} : memref<1x16x128xf32, #tpu.memory_space<vmem>>, vector<1x16x128xf32>,
    %c0_15 = arith.constant 0 : index
    %c0_16 = arith.constant 0 : index
    %c0_17 = arith.constant 0 : index
    %44 = vector.load %arg5[%c0_15, %c0_16, %c0_17] : memref<1x16x128xf32, #tpu.memory_space<vmem>>, vector<1x16x128xf32>
    %45 = vector.shape_cast %44 : vector<1x16x128xf32> to vector<16x128xf32>
    %46 = arith.addf %45, %36 : vector<16x128xf32>
    %c0_18 = arith.constant 0 : index
    %c0_19 = arith.constant 0 : index
    %c0_20 = arith.constant 0 : index
    %47 = vector.load %arg5[%c0_18, %c0_19, %c0_20] : memref<1x16x128xf32, #tpu.memory_space<vmem>>, vector<1x16x128xf32>
    %48 = vector.shape_cast %47 : vector<1x16x128xf32> to vector<16x128xf32>
    %49 = vector.shape_cast %46 : vector<16x128xf32> to vector<1x16x128xf32>
    tpu.vector_store %arg5[%c0_18, %c0_19, %c0_20], %49 {strides = array<i32>} : memref<1x16x128xf32, #tpu.memory_space<vmem>>, vector<1x16x128xf32>,
    %c0_21 = arith.constant 0 : index
    %c0_22 = arith.constant 0 : index
    %c0_23 = arith.constant 0 : index
    %50 = vector.load %arg6[%c0_21, %c0_22, %c0_23] : memref<1x16x128xf32, #tpu.memory_space<vmem>>, vector<1x16x128xf32>
    %51 = vector.shape_cast %50 : vector<1x16x128xf32> to vector<16x128xf32>
    %52 = arith.addf %51, %37 : vector<16x128xf32>
    %c0_24 = arith.constant 0 : index
    %c0_25 = arith.constant 0 : index
    %c0_26 = arith.constant 0 : index
    %53 = vector.load %arg6[%c0_24, %c0_25, %c0_26] : memref<1x16x128xf32, #tpu.memory_space<vmem>>, vector<1x16x128xf32>
    %54 = vector.shape_cast %53 : vector<1x16x128xf32> to vector<16x128xf32>
    %55 = vector.shape_cast %52 : vector<16x128xf32> to vector<1x16x128xf32>
    tpu.vector_store %arg6[%c0_24, %c0_25, %c0_26], %55 {strides = array<i32>} : memref<1x16x128xf32, #tpu.memory_space<vmem>>, vector<1x16x128xf32>,
    return
  }
  func.func @transform_0(%arg0: i32, %arg1: i32) -> (i32, i32) {
    %c1_i32 = arith.constant 1 : i32
    %0 = arith.muli %arg0, %c1_i32 : i32
    %1 = arith.addi %0, %arg1 : i32
    %c0_i32 = arith.constant 0 : i32
    %2 = arith.minsi %1, %c0_i32 : i32
    %c0_i32_0 = arith.constant 0 : i32
    %c0_i32_1 = arith.constant 0 : i32
    return %2, %c0_i32_0 : i32, i32
  }
  func.func @transform_1(%arg0: i32, %arg1: i32) -> (i32, i32) {
    %c1_i32 = arith.constant 1 : i32
    %0 = arith.muli %arg0, %c1_i32 : i32
    %1 = arith.addi %0, %arg1 : i32
    %c0_i32 = arith.constant 0 : i32
    %2 = arith.minsi %1, %c0_i32 : i32
    %c0_i32_0 = arith.constant 0 : i32
    %c0_i32_1 = arith.constant 0 : i32
    return %2, %c0_i32_0 : i32, i32
  }
  func.func @transform_2(%arg0: i32, %arg1: i32) -> (i32, i32, i32) {
    %c0_i32 = arith.constant 0 : i32
    %c0_i32_0 = arith.constant 0 : i32
    %c0_i32_1 = arith.constant 0 : i32
    return %arg0, %c0_i32, %c0_i32_0 : i32, i32, i32
  }
  func.func @transform_3(%arg0: i32, %arg1: i32) -> (i32, i32, i32) {
    %c0_i32 = arith.constant 0 : i32
    %c0_i32_0 = arith.constant 0 : i32
    %c0_i32_1 = arith.constant 0 : i32
    return %arg0, %c0_i32, %c0_i32_0 : i32, i32, i32
  }
  func.func @transform_4(%arg0: i32, %arg1: i32) -> (i32, i32, i32) {
    %c0_i32 = arith.constant 0 : i32
    %c0_i32_0 = arith.constant 0 : i32
    %c0_i32_1 = arith.constant 0 : i32
    return %arg0, %c0_i32, %c0_i32_0 : i32, i32, i32
  }
}

</mosaic_0001>

<llo_original>
// kernel: tpu_custom_call.1
$region0: #{tpu_custom_call.1}
  #allocation0 [shape = 'u32[]', space=smem, size = 0x4, offset = 0x4, fixed_abs, tag = 'smem constant byte address 0x4 - core index']
  #allocation1 [shape = 'u32[144,128]{1,0:T(1,128)}', space=vmem, size = 0x12000, scoped, tag = 'internal scratch']
  %s0 = inlined_call_operand.hbm [shape: f32[16,128], index: 0, kind: input, shape index: {}]
  %s1 = inlined_call_operand.hbm [shape: f32[16,128], index: 1, kind: input, shape index: {}]
  %s2 = inlined_call_operand.hbm [shape: f32[1,16,128], index: 2, kind: output, shape index: {0}]
  %s3 = inlined_call_operand.hbm [shape: f32[1,16,128], index: 3, kind: output, shape index: {1}]
  %s4 = inlined_call_operand.hbm [shape: f32[1,16,128], index: 4, kind: output, shape index: {2}]
  %5 = xla_tuple %s2, %s3, %s4
  %s6 = sld [smem:[#allocation0]]
  $region46: #{tpu_custom_call.1} parent=0
    _
  %s8 = ssub.s32 1, %s6
  %s9 = scalar_select 0, %s8, %s6
  $region1: #{tpu_custom_call.1} parent=0
    #allocation2 [shape = 'u8[8192]{0}', space=vmem, size = 0x2000, scoped, tag = 'input window, operand 0, single buffered']
    #allocation3 [shape = 's32[1]{0}', space=sflag, size = 0x4, scoped, tag = 'scoped memory for tpu_custom_call.1']
    #allocation4 [shape = 's32[1]{0}', space=sflag, size = 0x4, scoped, tag = 'scoped memory for tpu_custom_call.1']
    #allocation5 [shape = 'u8[8192]{0}', space=vmem, size = 0x2000, scoped, tag = 'input window, operand 1, single buffered']
    #allocation6 [shape = 's32[1]{0}', space=sflag, size = 0x4, scoped, tag = 'scoped memory for tpu_custom_call.1']
    #allocation7 [shape = 'u8[8192]{0}', space=vmem, size = 0x2000, scoped, tag = 'output window, operand 0, single buffered']
    #allocation8 [shape = 'u8[8192]{0}', space=vmem, size = 0x2000, scoped, tag = 'output window, operand 1, single buffered']
    #allocation9 [shape = 's32[1]{0}', space=sflag, size = 0x4, scoped, tag = 'scoped memory for tpu_custom_call.1']
    #allocation10 [shape = 'u8[8192]{0}', space=vmem, size = 0x2000, scoped, tag = 'output window, operand 2, single buffered']
    %10 = vsyncpa [#allocation3], 0
    %11 = vsyncpa [#allocation6], 0
    %12 = vsyncpa [#allocation4], 0
    %13 = vsyncpa [#allocation9], 0
    // Predicated region
    $region2: #{tpu_custom_call.1} parent=1 // pred_check
      _
    $region3: #{tpu_custom_call.1} parent=1 // pred_check_branch
      %15 = sbr.rel (0) target = $region5
    $region4: #{tpu_custom_call.1} parent=1 // pred_region
      %s16 = sadd.s32 0, 0
      %p17 = scmp.lt.s32.totalorder %s16, 0
      %s18 = scalar_select %p17, %s16, 0
      %s19 = smul.u32 2, %s18
      %s21 = ssub.s32 256, 256
      %22 = vsyncadd [#allocation3], %s21
      %s23 = smul.addr %s19, 128
      %s24 = scalar_lea.hbm %s0, %s23
      %s25 = sshll.u32 [#allocation2], 4
      %s26 = int_to_ptr.vmem [resolvable:$true] %s25
      %31 = dma.hbm_to_vmem [thread:$0]  %s24, 256, %s26, [#allocation3], 128, 128, 8
    $region5: #{tpu_custom_call.1} parent=1 // pred_fallthru
      _
    // Predicated region
    $region6: #{tpu_custom_call.1} parent=1 // pred_check
      _
    $region7: #{tpu_custom_call.1} parent=1 // pred_check_branch
      %33 = sbr.rel (0) target = $region9
    $region8: #{tpu_custom_call.1} parent=1 // pred_region
      %s34 = sadd.s32 0, 0
      %p35 = scmp.lt.s32.totalorder %s34, 0
      %s36 = scalar_select %p35, %s34, 0
      %s37 = smul.u32 2, %s36
      %s39 = ssub.s32 256, 256
      %40 = vsyncadd [#allocation6], %s39
      %s41 = smul.addr %s37, 128
      %s42 = scalar_lea.hbm %s1, %s41
      %s43 = sshll.u32 [#allocation5], 4
      %s44 = int_to_ptr.vmem [resolvable:$true] %s43
      %49 = dma.hbm_to_vmem [thread:$0]  %s42, 256, %s44, [#allocation6], 128, 128, 8
    $region9: #{tpu_custom_call.1} parent=1 // pred_fallthru
      _
    // Predicated region
    $region10: #{tpu_custom_call.1} parent=1 // pred_check
      _
    $region11: #{tpu_custom_call.1} parent=1 // pred_check_branch
      %51 = sbr.rel (0) target = $region13
    $region12: #{tpu_custom_call.1} parent=1 // pred_region
      %52 = dma.done [#allocation3], 256
    $region13: #{tpu_custom_call.1} parent=1 // pred_fallthru
      _
    // Predicated region
    $region14: #{tpu_custom_call.1} parent=1 // pred_check
      _
    $region15: #{tpu_custom_call.1} parent=1 // pred_check_branch
      %54 = sbr.rel (0) target = $region17
    $region16: #{tpu_custom_call.1} parent=1 // pred_region
      %55 = dma.done [#allocation6], 256
    $region17: #{tpu_custom_call.1} parent=1 // pred_fallthru
      _
    %s56 = sadd.s32 0, 0
    %p57 = scmp.lt.s32.totalorder %s56, 0
    %s58 = scalar_select %p57, %s56, 0
    %s59 = smul.u32 2, %s58
    %s60 = sadd.s32 0, 0
    %p61 = scmp.lt.s32.totalorder %s60, 0
    %s62 = scalar_select %p61, %s60, 0
    %s63 = smul.u32 2, %s62
    %p64 = scmp.eq.s32.totalorder 0, 0
    // Predicated region
    $region18: #{tpu_custom_call.1} parent=1 // pred_check
      %p65 = pneg %p64
    $region19: #{tpu_custom_call.1} parent=1 // pred_check_branch
      %67 = sbr.rel (%p65) target = $region21
    $region20: #{tpu_custom_call.1} parent=1 // pred_region
      %68 = vst [vmem:[#allocation7] sm:$0xff] 0.0
      %69 = vst [vmem:[#allocation7 + $0x8] sm:$0xff] 0.0
      %70 = vst [vmem:[#allocation8] sm:$0xff] 0.0
      %71 = vst [vmem:[#allocation8 + $0x8] sm:$0xff] 0.0
      %72 = vst [vmem:[#allocation10] sm:$0xff] 0.0
      %73 = vst [vmem:[#allocation10 + $0x8] sm:$0xff] 0.0
    $region21: #{tpu_custom_call.1} parent=1 // pred_fallthru
      _
    %v74 = vld [vmem:[#allocation2] sm:$0xff]
    %v75 = vld [vmem:[#allocation2 + $0x8] sm:$0xff]
    %v76 = vld [vmem:[#allocation5] sm:$0xff]
    %v77 = vld [vmem:[#allocation5 + $0x8] sm:$0xff]
    %v78 = vand.u32 2147483647, %v74
    %v79 = vand.u32 2147483647, %v75
    %v80 = vsub.f32 0.0, %v78
    %v81 = vsub.f32 0.0, %v79
    %v82 = vmul.f32 %v80, 1.442695
    %v83 = vpow.pop %v82
    %v84 = vmul.f32 %v81, 1.442695
    %v85 = vpow.pop %v84
    %v86 = vmul.f32 %v74, %v76
    %v87 = vmul.f32 %v75, %v77
    %v88 = vmax.f32 %v74, 0.0
    %v89 = vmax.f32 %v75, 0.0
    %v90 = vsub.f32 %v88, %v86
    %v91 = vsub.f32 %v89, %v87
    %v92 = vadd.f32 %v83, 1.0
    %v93 = vlog2.pop %v92
    %v94 = vmul.f32 %v93, 0.6931472
    %v95 = vmul.f32 -0.5, %v83
    %v96 = vadd.f32 %v95, 1.0
    %v97 = vmul.f32 %v96, %v83
    %v98 = vand.u32 2147483647, %v83
    %vm99 = vcmp.lt.f32.partialorder %v98, 0.0004427343
    %v100 = vsel %vm99, %v97, %v94
    %v101 = vadd.f32 %v85, 1.0
    %v102 = vlog2.pop %v101
    %v103 = vmul.f32 %v102, 0.6931472
    %v104 = vmul.f32 -0.5, %v85
    %v105 = vadd.f32 %v104, 1.0
    %v106 = vmul.f32 %v105, %v85
    %v107 = vand.u32 2147483647, %v85
    %vm108 = vcmp.lt.f32.partialorder %v107, 0.0004427343
    %v109 = vsel %vm108, %v106, %v103
    %v110 = vadd.f32 %v90, %v100
    %v111 = vadd.f32 %v91, %v109
    %v112 = vadd.f32 %v83, 1.0
    %v113 = vadd.f32 %v85, 1.0
    %v114 = vrcp.pop %v112
    %v115 = vrcp.pop %v113
    %v116 = vmul.f32 %v112, %v114
    %v117 = vmul.f32 %v113, %v115
    %v118 = vsub.f32 2.0, %v116
    %v119 = vsub.f32 2.0, %v117
    %v120 = vmul.f32 %v114, %v118
    %v121 = vmul.f32 %v115, %v119
    %v122 = vsub.f32 %v86, %v88
    %v123 = vsub.f32 %v87, %v89
    %v124 = vmul.f32 %v122, 1.442695
    %v125 = vpow.pop %v124
    %v126 = vmul.f32 %v123, 1.442695
    %v127 = vpow.pop %v126
    %v128 = vmul.f32 %v125, %v120
    %v129 = vmul.f32 %v127, %v121
    %v130 = vsub.f32 1.0, %v128
    %v131 = vsub.f32 1.0, %v129
    %v132 = vmul.f32 %v130, %v130
    %v133 = vmul.f32 %v131, %v131
    %v134 = vmul.f32 %v132, %v132
    %v135 = vmul.f32 %v133, %v133
    %v136 = vmul.f32 %v134, %v134
    %v137 = vmul.f32 %v135, %v135
    %v138 = vmul.f32 %v136, %v132
    %v139 = vmul.f32 %v137, %v133
    %v140 = vmul.f32 %v138, %v110
    %v141 = vmul.f32 %v139, %v111
    %vm142 = vcmp.ge.f32.partialorder %v74, 0.0
    %vm143 = vcmp.ge.f32.partialorder %v75, 0.0
    %v144 = vmul.f32 %v83, %v120
    %v145 = vmul.f32 %v85, %v121
    %v146 = vsel %vm142, %v120, %v144
    %v147 = vsel %vm143, %v121, %v145
    %v148 = vmul.f32 %v146, %v76
    %v149 = vmul.f32 %v147, %v77
    %v150 = vadd.f32 %v146, %v76
    %v151 = vadd.f32 %v147, %v77
    %v152 = vld [vmem:[#allocation7] sm:$0xff]
    %v153 = vld [vmem:[#allocation7 + $0x8] sm:$0xff]
    %v154 = vadd.f32 %v152, %v140
    %v155 = vadd.f32 %v153, %v141
    %156 = vst [vmem:[#allocation7] sm:$0xff] %v154
    %157 = vst [vmem:[#allocation7 + $0x8] sm:$0xff] %v155
    %v158 = vld [vmem:[#allocation8] sm:$0xff]
    %v159 = vld [vmem:[#allocation8 + $0x8] sm:$0xff]
    %v160 = vadd.f32 %v158, %v148
    %v161 = vadd.f32 %v159, %v149
    %162 = vst [vmem:[#allocation8] sm:$0xff] %v160
    %163 = vst [vmem:[#allocation8 + $0x8] sm:$0xff] %v161
    %v164 = vld [vmem:[#allocation10] sm:$0xff]
    %v165 = vld [vmem:[#allocation10 + $0x8] sm:$0xff]
    %v166 = vadd.f32 %v164, %v150
    %v167 = vadd.f32 %v165, %v151
    %168 = vst [vmem:[#allocation10] sm:$0xff] %v166
    %169 = vst [vmem:[#allocation10 + $0x8] sm:$0xff] %v167
    // Predicated region
    $region22: #{tpu_custom_call.1} parent=1 // pred_check
      _
    $region23: #{tpu_custom_call.1} parent=1 // pred_check_branch
      %171 = sbr.rel (0) target = $region25
    $region24: #{tpu_custom_call.1} parent=1 // pred_region
      %s173 = ssub.s32 256, 256
      %174 = vsyncadd [#allocation4], %s173
      %s175 = sshll.u32 [#allocation7], 4
      %s176 = int_to_ptr.vmem [resolvable:$true] %s175
      %181 = dma.vmem_to_hbm [thread:$0]  %s176, 256, %s2, [#allocation4], 128, 128, 8
    $region25: #{tpu_custom_call.1} parent=1 // pred_fallthru
      _
    // Predicated region
    $region26: #{tpu_custom_call.1} parent=1 // pred_check
      _
    $region27: #{tpu_custom_call.1} parent=1 // pred_check_branch
      %183 = sbr.rel (0) target = $region29
    $region28: #{tpu_custom_call.1} parent=1 // pred_region
      %s185 = ssub.s32 256, 256
      %186 = vsyncadd [#allocation9], %s185
      %s187 = sshll.u32 [#allocation8], 4
      %s188 = int_to_ptr.vmem [resolvable:$true] %s187
      %193 = dma.vmem_to_hbm [thread:$0]  %s188, 256, %s3, [#allocation9], 128, 128, 8
    $region29: #{tpu_custom_call.1} parent=1 // pred_fallthru
      _
    // Predicated region
    $region30: #{tpu_custom_call.1} parent=1 // pred_check
      _
    $region31: #{tpu_custom_call.1} parent=1 // pred_check_branch
      %195 = sbr.rel (0) target = $region33
    $region32: #{tpu_custom_call.1} parent=1 // pred_region
      %s197 = ssub.s32 256, 256
      %198 = vsyncadd [#allocation9], %s197
      %s199 = sshll.u32 [#allocation10], 4
      %s200 = int_to_ptr.vmem [resolvable:$true] %s199
      %205 = dma.vmem_to_hbm [thread:$0]  %s200, 256, %s4, [#allocation9], 128, 128, 8
    $region33: #{tpu_custom_call.1} parent=1 // pred_fallthru
      _
    // Predicated region
    $region34: #{tpu_custom_call.1} parent=1 // pred_check
      _
    $region35: #{tpu_custom_call.1} parent=1 // pred_check_branch
      %207 = sbr.rel (0) target = $region37
    $region36: #{tpu_custom_call.1} parent=1 // pred_region
      %208 = dma.done [#allocation4], 256
    $region37: #{tpu_custom_call.1} parent=1 // pred_fallthru
      _
    // Predicated region
    $region38: #{tpu_custom_call.1} parent=1 // pred_check
      _
    $region39: #{tpu_custom_call.1} parent=1 // pred_check_branch
      %210 = sbr.rel (0) target = $region41
    $region40: #{tpu_custom_call.1} parent=1 // pred_region
      %211 = dma.done [#allocation9], 256
    $region41: #{tpu_custom_call.1} parent=1 // pred_fallthru
      _
    // Predicated region
    $region42: #{tpu_custom_call.1} parent=1 // pred_check
      _
    $region43: #{tpu_custom_call.1} parent=1 // pred_check_branch
      %213 = sbr.rel (0) target = $region45
    $region44: #{tpu_custom_call.1} parent=1 // pred_region
      %214 = dma.done [#allocation9], 256
    $region45: #{tpu_custom_call.1} parent=1 // pred_fallthru
      _
    %215 = vsyncpa [#allocation3], 1
    %216 = vsyncpa [#allocation6], 1
    %217 = vsyncpa [#allocation4], 1
    %218 = vsyncpa [#allocation9], 1

</llo_original>
